<compile_context>
chip_gen: v7x
topology: tpu7x:2x2x1
jax: 0.10.0
libtpu: 0.0.40
codegen_flags: <defaults>
</compile_context>

<pallas_src>
import functools

import jax
import jax.numpy as jnp
from jax.experimental import pallas as pl
from jax.experimental.pallas import tpu as pltpu


COEFF_DIM = 257
# Selected coefficient columns: [80:144) + [224:227) + [254:257)  -> 70 dims.
INDEX_LIST = list(range(80, 144)) + list(range(224, 227)) + list(range(254, 257))
N_SEL = len(INDEX_LIST)          # 70
N_PAD = 128                      # lane-dense padding of the selected head


# --------------------------------------------------------------------------
# Fused kernel: (x1 - x2) spatial-sum accumulate  ->  head  ->  mean-L1 scalar
# --------------------------------------------------------------------------
def _params_loss_kernel(x1_ref, x2_ref, w_ref, o_ref, acc_ref, *, scale):
    """x1_ref, x2_ref : (B, C, T_HW) image-pair tile (any float dtype)
       w_ref          : (C, N_PAD) f32 head weight restricted to the 70
                        selected coefficients, zero-padded to 128 lanes
       o_ref          : (1, 1) f32 scalar loss in SMEM
       acc_ref        : (B, C) f32 VMEM accumulator of sum_{HW}(x1 - x2)
       scale          : static float = 0.5 / (HW * B * N_SEL)
    """
    k = pl.program_id(0)

    @pl.when(k == 0)
    def _init():
        acc_ref[...] = jnp.zeros_like(acc_ref)

    # process(x) = (x + 1) * 0.5: the "+1" cancels in the difference and the
    # 0.5 (and the 1/HW of the GAP) is folded into `scale` below, so the per-
    # element work is a single f32 subtract + a lane reduction.
    d = x1_ref[...].astype(jnp.float32) - x2_ref[...].astype(jnp.float32)
    acc_ref[...] += jnp.sum(d, axis=-1)                       # (B, C)

    @pl.when(k == pl.num_programs(0) - 1)
    def _finalize():
        # Head on the selected columns; MXU is idle in this kernel so a single
        # jnp.dot is free and keeps VPU/XLU slots clear.  The head bias cancels
        # in y1 - y2 and was dropped.  Padded columns (>= N_SEL) of w are zero
        # -> they add 0 to the L1 sum, so `scale` reproduces nn.L1Loss(mean)
        # over (B, 70).
        y = jnp.dot(acc_ref[...], w_ref[...],
                    preferred_element_type=jnp.float32)        # (B, N_PAD)
        o_ref[0, 0] = jnp.sum(jnp.abs(y)) * scale


# --------------------------------------------------------------------------
# One-off head-weight preparation (frozen pretrained params)
# --------------------------------------------------------------------------
def prepare_head_weight(w):
    """Static slice + concat (no dynamic gather) of the 70 selected columns,
    zero-padded to 128 lanes so the in-kernel head output is lane-dense."""
    w_sel = jnp.concatenate(
        [w[:, 80:144], w[:, 224:227], w[:, 254:257]], axis=1)   # (C, 70)
    return jnp.pad(w_sel, ((0, 0), (0, N_PAD - N_SEL))).astype(jnp.float32)


def _pick_hw_tile(hw, b, c, vmem_budget_bytes=8 << 20):
    """Largest multiple-of-128 divisor of HW whose double-buffered footprint
    (2 inputs x 2 pipeline buffers, f32) stays within `vmem_budget_bytes` —
    safe under the v5e 16 MiB / v7x 32 MiB scoped-VMEM defaults."""
    if hw % 128 != 0:
        return hw                                # tiny/odd spatial: full block
    bytes_per_lane = 2 * 2 * b * c * 4           # 2 inputs x 2 buffers x f32
    max_t = max(128, (vmem_budget_bytes // bytes_per_lane) // 128 * 128)
    k = hw // 128
    best = 1
    for m in range(1, k + 1):
        if k % m == 0 and m * 128 <= max_t:
            best = m
    return best * 128


# --------------------------------------------------------------------------
# ParamsLoss forward
# --------------------------------------------------------------------------
def params_loss(x1, x2, w_pad, *, t_hw=None):
    """Mean L1 loss between the selected recon coefficients of x1 and x2.

    x1, x2 : (B, C, H, W) images (f32 or bf16 — upcast happens in-kernel)
    w_pad  : (C, 128) head weight from prepare_head_weight()
    """
    B, C, H, W = x1.shape
    HW = H * W
    if t_hw is None:
        t_hw = _pick_hw_tile(HW, B, C)
    assert HW % t_hw == 0, (HW, t_hw)
    n_steps = HW // t_hw
    scale = 0.5 / (HW * B * N_SEL)               # folds process-0.5, GAP 1/HW, L1 mean

    x1f = x1.reshape(B, C, HW)                   # contiguous glue reshape (free)
    x2f = x2.reshape(B, C, HW)

    in_bytes = x1f.size * x1f.dtype.itemsize + x2f.size * x2f.dtype.itemsize

    out = pl.pallas_call(
        functools.partial(_params_loss_kernel, scale=scale),
        out_shape=jax.ShapeDtypeStruct((1, 1), jnp.float32),
        grid=(n_steps,),
        in_specs=[
            pl.BlockSpec((B, C, t_hw), lambda k: (0, 0, k)),
            pl.BlockSpec((B, C, t_hw), lambda k: (0, 0, k)),
            pl.BlockSpec((C, N_PAD), lambda k: (0, 0)),
        ],
        out_specs=pl.BlockSpec(memory_space=pltpu.MemorySpace.SMEM),
        scratch_shapes=[pltpu.VMEM((B, C), jnp.float32)],
        compiler_params=pltpu.CompilerParams(
            dimension_semantics=("arbitrary",),          # HW axis is a reduction
            vmem_limit_bytes=32 * 1024 * 1024,
        ),
        cost_estimate=pl.CostEstimate(
            flops=3 * B * C * HW,                        # sub + reduce-add (+ head, negligible)
            transcendentals=0,
            bytes_accessed=in_bytes + C * N_PAD * 4 + 4,
        ),
    )(x1f, x2f, w_pad)
    return out[0, 0]


if __name__ == "__main__":
    key = jax.random.PRNGKey(0)
    k1, k2, kw, kb = jax.random.split(key, 4)

    B, C, H, W = 2, 3, 16, 16                          # small NCHW image pair
    x1 = jax.random.normal(k1, (B, C, H, W), dtype=jnp.float32)
    x2 = jax.random.normal(k2, (B, C, H, W), dtype=jnp.float32)

    # deterministic synthetic "pretrained" head parameters
    w = jax.random.normal(kw, (C, COEFF_DIM), dtype=jnp.float32) * 0.1
    b = jax.random.normal(kb, (1, COEFF_DIM), dtype=jnp.float32) * 0.01

    # Hoisted once at "model init" (frozen pretrained params); the bias is not
    # needed because it cancels in y1 - y2.
    w_pad = prepare_head_weight(w)

    # t_hw=128 -> grid=(2,) at HW=256, exercising the accumulator/pipeline path.
    loss_fn = jax.jit(functools.partial(params_loss, t_hw=128))
    loss = loss_fn(x1, x2, w_pad)
    jax.block_until_ready(loss)

    # pure-JAX reference matching the unfused module semantics (incl. bias).
    idx = jnp.array(INDEX_LIST, dtype=jnp.int32)

    def ref(x1, x2, w, b):
        def fwd(x):
            p = (x + 1.0) * 0.5
            feat = p.reshape(B, C, H * W).mean(axis=-1)
            return feat @ w + b
        y1, y2 = fwd(x1), fwd(x2)
        return jnp.mean(jnp.abs(y1[:, idx] - y2[:, idx]))

    ref_loss = ref(x1, x2, w, b)
    assert jnp.allclose(loss, ref_loss, rtol=5e-4, atol=1e-6), (loss, ref_loss)

    print("KERNEL_OK")
</pallas_src>

<mosaic_0001>
module attributes {stable_mosaic.version = 11 : i64} {
  func.func @_params_loss_kernel(%arg0: i32, %arg1: memref<2x3x128xf32, #tpu.memory_space<vmem>>, %arg2: memref<2x3x128xf32, #tpu.memory_space<vmem>>, %arg3: memref<3x128xf32, #tpu.memory_space<vmem>>, %arg4: memref<1x1xf32, #tpu.memory_space<smem>>, %arg5: memref<2x3xf32, #tpu.memory_space<vmem>>) attributes {dimension_semantics = [#tpu.dimension_semantics<arbitrary>], iteration_bounds = array<i64: 2>, scalar_prefetch = 0 : i64, scratch_operands = 1 : i64, tpu.core_type = #tpu.core_type<tc>, window_params = [{transform_indices = @transform_0, window_bounds = array<i64: 2, 3, 128>}, {transform_indices = @transform_1, window_bounds = array<i64: 2, 3, 128>}, {pipeline_mode = #tpu.pipeline_mode<synchronous>, transform_indices = @transform_2, window_bounds = array<i64: 3, 128>}, {transform_indices = @transform_3, window_bounds = array<i64: 1, 1>}]} {
    %c0_i32 = arith.constant 0 : i32
    %0 = arith.cmpi eq, %arg0, %c0_i32 : i32
    %1 = arith.extui %0 : i1 to i32
    %c0_i32_0 = arith.constant 0 : i32
    %2 = arith.cmpi ne, %1, %c0_i32_0 : i32
    scf.if %2 {
      %cst_11 = arith.constant 0.000000e+00 : f32
      %13 = vector.broadcast %cst_11 : f32 to vector<2x3xf32>
      %c0_12 = arith.constant 0 : index
      %c0_13 = arith.constant 0 : index
      %14 = vector.load %arg5[%c0_12, %c0_13] : memref<2x3xf32, #tpu.memory_space<vmem>>, vector<2x3xf32>
      tpu.vector_store %arg5[%c0_12, %c0_13], %13 {strides = array<i32>} : memref<2x3xf32, #tpu.memory_space<vmem>>, vector<2x3xf32>,
    } else {
    }
    %c0 = arith.constant 0 : index
    %c0_1 = arith.constant 0 : index
    %c0_2 = arith.constant 0 : index
    %3 = vector.load %arg1[%c0, %c0_1, %c0_2] : memref<2x3x128xf32, #tpu.memory_space<vmem>>, vector<2x3x128xf32>
    %c0_3 = arith.constant 0 : index
    %c0_4 = arith.constant 0 : index
    %c0_5 = arith.constant 0 : index
    %4 = vector.load %arg2[%c0_3, %c0_4, %c0_5] : memref<2x3x128xf32, #tpu.memory_space<vmem>>, vector<2x3x128xf32>
    %5 = arith.subf %3, %4 : vector<2x3x128xf32>
    %c0_6 = arith.constant 0 : index
    %c0_7 = arith.constant 0 : index
    %6 = vector.load %arg5[%c0_6, %c0_7] : memref<2x3xf32, #tpu.memory_space<vmem>>, vector<2x3xf32>
    %cst = arith.constant dense<0.000000e+00> : vector<2x3xf32>
    %7 = vector.multi_reduction <add>, %5, %cst [2] : vector<2x3x128xf32> to vector<2x3xf32>
    %8 = arith.addf %6, %7 : vector<2x3xf32>
    %c0_8 = arith.constant 0 : index
    %c0_9 = arith.constant 0 : index
    %9 = vector.load %arg5[%c0_8, %c0_9] : memref<2x3xf32, #tpu.memory_space<vmem>>, vector<2x3xf32>
    tpu.vector_store %arg5[%c0_8, %c0_9], %8 {strides = array<i32>} : memref<2x3xf32, #tpu.memory_space<vmem>>, vector<2x3xf32>,
    %c1_i32 = arith.constant 1 : i32
    %10 = arith.cmpi eq, %arg0, %c1_i32 : i32
    %11 = arith.extui %10 : i1 to i32
    %c0_i32_10 = arith.constant 0 : i32
    %12 = arith.cmpi ne, %11, %c0_i32_10 : i32
    scf.if %12 {
      %c0_11 = arith.constant 0 : index
      %c0_12 = arith.constant 0 : index
      %13 = vector.load %arg5[%c0_11, %c0_12] : memref<2x3xf32, #tpu.memory_space<vmem>>, vector<2x3xf32>
      %c0_13 = arith.constant 0 : index
      %c0_14 = arith.constant 0 : index
      %14 = vector.load %arg3[%c0_13, %c0_14] : memref<3x128xf32, #tpu.memory_space<vmem>>, vector<3x128xf32>
      %cst_15 = arith.constant dense<0.000000e+00> : vector<2x128xf32>
      %15 = tpu.matmul %13, %14, %cst_15 {dimension_numbers = #tpu.dot_dimension_numbers<[1], [0], [0], [1], [0, 0, 1, 1], [], []>} : vector<2x3xf32>, vector<3x128xf32>, vector<2x128xf32> -> vector<2x128xf32>
      %16 = math.absf %15 : vector<2x128xf32>
      %17 = vector.shape_cast %16 : vector<2x128xf32> to vector<1x2x128xf32>
      %cst_16 = arith.constant dense<0.000000e+00> : vector<1xf32>
      %18 = vector.multi_reduction <add>, %17, %cst_16 [1, 2] : vector<1x2x128xf32> to vector<1xf32>
      %19 = vector.shape_cast %18 : vector<1xf32> to vector<1x1x1xf32>
      %20 = vector.extract %19[0, 0, 0] : f32 from vector<1x1x1xf32>
      %cst_17 = arith.constant 1.39508929E-5 : f32
      %21 = arith.mulf %20, %cst_17 : f32
      %c0_18 = arith.constant 0 : index
      %c0_19 = arith.constant 0 : index
      %22 = memref.load %arg4[%c0_18, %c0_19] : memref<1x1xf32, #tpu.memory_space<smem>>
      memref.store %21, %arg4[%c0_18, %c0_19] : memref<1x1xf32, #tpu.memory_space<smem>>
    } else {
    }
    return
  }
  func.func @transform_0(%arg0: i32) -> (i32, i32, i32) {
    %c0_i32 = arith.constant 0 : i32
    %c0_i32_0 = arith.constant 0 : i32
    %c0_i32_1 = arith.constant 0 : i32
    return %c0_i32, %c0_i32_0, %arg0 : i32, i32, i32
  }
  func.func @transform_1(%arg0: i32) -> (i32, i32, i32) {
    %c0_i32 = arith.constant 0 : i32
    %c0_i32_0 = arith.constant 0 : i32
    %c0_i32_1 = arith.constant 0 : i32
    return %c0_i32, %c0_i32_0, %arg0 : i32, i32, i32
  }
  func.func @transform_2(%arg0: i32) -> (i32, i32) {
    %c0_i32 = arith.constant 0 : i32
    %c0_i32_0 = arith.constant 0 : i32
    %c0_i32_1 = arith.constant 0 : i32
    return %c0_i32, %c0_i32_0 : i32, i32
  }
  func.func @transform_3(%arg0: i32) -> (i32, i32) {
    %c0_i32 = arith.constant 0 : i32
    %c0_i32_0 = arith.constant 0 : i32
    %c0_i32_1 = arith.constant 0 : i32
    return %c0_i32, %c0_i32_0 : i32, i32
  }
}

</mosaic_0001>

<llo_original>
// kernel: params_loss.1
$region0: #{params_loss.1}
  #allocation0 [shape = 'u32[]', space=smem, size = 0x4, offset = 0x4, fixed_abs, tag = 'smem constant byte address 0x4 - core index']
  #allocation1 [shape = 'u32[144,128]{1,0:T(1,128)}', space=vmem, size = 0x12000, scoped, tag = 'internal scratch']
  #allocation2 [shape = 'f32[2,3]{1,0:T(2,128)}', space=vmem, size = 0x400, scoped, tag = 'scratch operand']
  %s0 = inlined_call_operand.vmem [shape: f32[2,3,256], index: 0, kind: input, shape index: {}]
  %s1 = inlined_call_operand.vmem [shape: f32[2,3,256], index: 1, kind: input, shape index: {}]
  %s2 = inlined_call_operand.vmem [shape: f32[3,128], index: 2, kind: input, shape index: {}]
  %s3 = inlined_call_operand.hbm [shape: f32[1,1], index: 3, kind: output, shape index: {}]
  %s4 = sld [smem:[#allocation0]]
  $region135: #{params_loss.1} parent=0
    _
  %s6 = ssub.s32 1, %s4
  %s7 = scalar_select 0, %s6, %s4
  $region1: #{params_loss.1} parent=0
    #allocation3 [shape = 'u8[8192]{0}', space=vmem, size = 0x2000, scoped, tag = 'input window, operand 0']
    #allocation4 [shape = 'u8[8192]{0}', space=vmem, size = 0x2000, scoped, tag = 'input window, operand 1']
    #allocation5 [shape = 'u8[512]{0}', space=smem, size = 0x200, scoped, tag = 'output window, operand 0, single buffered']
    #allocation6 [shape = 's32[2]{0}', space=sflag, size = 0x8, scoped, tag = 'scoped memory for params_loss.1']
    %8 = vsyncpa [#allocation6], 0
    loop: start=0, step=1, limit=4
    $region2: #{params_loss.1} parent=1 // loop_pre_header
      _
    $region3: #{params_loss.1} parent=1 // loop_header
      %s10 = sphi 0, %s14
      %p11 = scmp.ge.s32.totalorder %s10, 4
      %s20 = sphi 0, %s22
      %s23 = sphi 0, %s20
      %s24 = sphi 0, %s23
      %s40 = sphi 0, %s24
      %s46 = sphi 0, %s48
      %s49 = sphi 0, %s46
      %s50 = sphi 0, %s49
      %s66 = sphi 0, %s50
      %s70 = sphi 0, %s70
      %s72 = sphi 0, %s70
      %s73 = sphi 0, %s72
      %s87 = sphi 0, %s73
      %s91 = sphi 0, %s91
      %s93 = sphi 0, %s91
      %s94 = sphi 0, %s93
      %s108 = sphi 0, %s94
    $region4: #{params_loss.1} parent=1 // loop_header_branch
      %13 = sbr.rel (%p11) target = $region8
    $region5: #{params_loss.1} parent=1 // loop_body
      %s15 = ssub.s32 %s10, 1
      %s16 = ssub.s32 %s10, 2
      %s17 = sadd.s32 %s10, 1
      %s18 = ssub.s32 %s10, %s17
      %p19 = scmp.eq.s32.totalorder %s18, 0
      %s21 = sadd.s32 %s20, 1
      %s22 = scalar_select %p19, %s20, %s21
      %p25 = pneg %p19
      %p26 = scmp.eq.s32.totalorder %s10, 1
      %p27 = por %p25, %p26
      %p28 = scmp.ne.s32.totalorder %s20, %s23
      %p29 = scmp.eq.s32.totalorder %s10, 0
      %p30 = por %p28, %p29
      %p31 = scmp.ne.s32.totalorder %s20, %s23
      %p32 = scmp.eq.s32.totalorder %s15, 1
      %p33 = por %p31, %p32
      %p34 = scmp.ne.s32.totalorder %s23, %s24
      %p35 = scmp.eq.s32.totalorder %s15, 0
      %p36 = por %p34, %p35
      %p37 = scmp.ne.s32.totalorder %s23, %s24
      %p38 = scmp.eq.s32.totalorder %s16, 1
      %p39 = por %p37, %p38
      %p41 = scmp.ne.s32.totalorder %s24, %s40
      %p42 = scmp.eq.s32.totalorder %s16, 0
      %p43 = por %p41, %p42
      %s44 = ssub.s32 %s10, %s17
      %p45 = scmp.eq.s32.totalorder %s44, 0
      %s47 = sadd.s32 %s46, 1
      %s48 = scalar_select %p45, %s46, %s47
      %p51 = pneg %p45
      %p52 = scmp.eq.s32.totalorder %s10, 1
      %p53 = por %p51, %p52
      %p54 = scmp.ne.s32.totalorder %s46, %s49
      %p55 = scmp.eq.s32.totalorder %s10, 0
      %p56 = por %p54, %p55
      %p57 = scmp.ne.s32.totalorder %s46, %s49
      %p58 = scmp.eq.s32.totalorder %s15, 1
      %p59 = por %p57, %p58
      %p60 = scmp.ne.s32.totalorder %s49, %s50
      %p61 = scmp.eq.s32.totalorder %s15, 0
      %p62 = por %p60, %p61
      %p63 = scmp.ne.s32.totalorder %s49, %s50
      %p64 = scmp.eq.s32.totalorder %s16, 1
      %p65 = por %p63, %p64
      %p67 = scmp.ne.s32.totalorder %s50, %s66
      %p68 = scmp.eq.s32.totalorder %s16, 0
      %p69 = por %p67, %p68
      %s71 = sadd.s32 %s70, 1
      %p74 = scmp.eq.s32.totalorder %s10, 1
      %p75 = scmp.ne.s32.totalorder %s70, %s72
      %p76 = scmp.eq.s32.totalorder %s10, 0
      %p77 = por %p75, %p76
      %p78 = scmp.ne.s32.totalorder %s70, %s72
      %p79 = scmp.eq.s32.totalorder %s15, 1
      %p80 = por %p78, %p79
      %p81 = scmp.ne.s32.totalorder %s72, %s73
      %p82 = scmp.eq.s32.totalorder %s15, 0
      %p83 = por %p81, %p82
      %p84 = scmp.ne.s32.totalorder %s72, %s73
      %p85 = scmp.eq.s32.totalorder %s16, 1
      %p86 = por %p84, %p85
      %p88 = scmp.ne.s32.totalorder %s73, %s87
      %p89 = scmp.eq.s32.totalorder %s16, 0
      %p90 = por %p88, %p89
      %s92 = sadd.s32 %s91, 1
      %p95 = scmp.eq.s32.totalorder %s10, 1
      %p96 = scmp.ne.s32.totalorder %s91, %s93
      %p97 = scmp.eq.s32.totalorder %s10, 0
      %p98 = por %p96, %p97
      %p99 = scmp.ne.s32.totalorder %s91, %s93
      %p100 = scmp.eq.s32.totalorder %s15, 1
      %p101 = por %p99, %p100
      %p102 = scmp.ne.s32.totalorder %s93, %s94
      %p103 = scmp.eq.s32.totalorder %s15, 0
      %p104 = por %p102, %p103
      %p105 = scmp.ne.s32.totalorder %s93, %s94
      %p106 = scmp.eq.s32.totalorder %s16, 1
      %p107 = por %p105, %p106
      %p109 = scmp.ne.s32.totalorder %s94, %s108
      %p110 = scmp.eq.s32.totalorder %s16, 0
      %p111 = por %p109, %p110
      %p112 = scmp.le.s32.totalorder 1, %s10
      %p113 = scmp.lt.s32.totalorder %s10, 3
      %p114 = pnand %p112, %p113
      %p115 = pneg %p114
      // Predicated region
      $region9: #{params_loss.1} parent=5 // pred_check
        _
      $region10: #{params_loss.1} parent=5 // pred_check_branch
        %117 = sbr.rel (%p114) target = $region12
      $region11: #{params_loss.1} parent=5 // pred_region
        %s118 = ssub.s32 %s10, 1
        // Predicated region
        $region13: #{params_loss.1} parent=11 // pred_check
          %p119 = pneg %p83
        $region14: #{params_loss.1} parent=11 // pred_check_branch
          %121 = sbr.rel (%p119) target = $region16
        $region15: #{params_loss.1} parent=11 // pred_region
          _
        $region16: #{params_loss.1} parent=11 // pred_fallthru
          _
      $region12: #{params_loss.1} parent=5 // pred_fallthru
        _
      %p122 = scmp.lt.s32.totalorder %s10, 2
      // Predicated region
      $region17: #{params_loss.1} parent=5 // pred_check
        %p123 = pneg %p122
      $region18: #{params_loss.1} parent=5 // pred_check_branch
        %125 = sbr.rel (%p123) target = $region20
      $region19: #{params_loss.1} parent=5 // pred_region
        // Predicated region
        $region21: #{params_loss.1} parent=19 // pred_check
          %p126 = pneg %p30
        $region22: #{params_loss.1} parent=19 // pred_check_branch
          %128 = sbr.rel (%p126) target = $region24
        $region23: #{params_loss.1} parent=19 // pred_region
          %s129 = sand.u32 %s20, 1
          %s130 = sand.u32 %s20, 1
          %s131 = smul.addr %s130, 8
          %s132 = scalar_lea.vmem [#allocation3], %s131
          %s133 = smul.addr %s10, 4
          %s134 = scalar_lea.vmem %s0, %s133
          // Predicated region
          $region25: #{params_loss.1} parent=23 // pred_check
            _
          $region26: #{params_loss.1} parent=23 // pred_check_branch
            %136 = sbr.rel (0) target = $region28
          $region27: #{params_loss.1} parent=23 // pred_region
            // Predicated region
            $region29: #{params_loss.1} parent=27 // pred_check
              _
            $region30: #{params_loss.1} parent=27 // pred_check_branch
              %138 = sbr.rel target = $region32
            $region31: #{params_loss.1} parent=27 // pred_region
              // Predicated region
              $region44: #{params_loss.1} parent=31 // pred_check
                _
              $region45: #{params_loss.1} parent=31 // pred_check_branch
                %155 = sbr.rel (0) target = $region47
              $region46: #{params_loss.1} parent=31 // pred_region
                loop: start=0, step=1, limit=1
                $region48: #{params_loss.1} parent=46 // loop_pre_header
                  _
                $region49: #{params_loss.1} parent=46 // loop_header
                  %s157 = sphi 0, %s161
                  %p158 = scmp.ge.s32.totalorder %s157, 1
                  %s162 = sphi %s134, %s134
                  %s163 = sphi %s132, %s132
                $region50: #{params_loss.1} parent=46 // loop_header_branch
                  %160 = sbr.rel (%p158) target = $region54
                $region51: #{params_loss.1} parent=46 // loop_body
                  _
                $region52: #{params_loss.1} parent=46 // loop_footer
                  %s161 = sadd.s32 1, %s157
                $region53: #{params_loss.1} parent=46 // loop_footer_branch
                  %156 = sbr.rel target = $region49
                $region54: #{params_loss.1} parent=46 // loop_exit
                  _
                loop: start=0, step=1, limit=1
                $region55: #{params_loss.1} parent=46 // loop_pre_header
                  _
                $region56: #{params_loss.1} parent=46 // loop_header
                  %s166 = sphi 0, %s170
                  %p167 = scmp.ge.s32.totalorder %s166, 1
                  %s171 = sphi %s134, %s134
                  %s172 = sphi %s132, %s132
                $region57: #{params_loss.1} parent=46 // loop_header_branch
                  %169 = sbr.rel (%p167) target = $region61
                $region58: #{params_loss.1} parent=46 // loop_body
                  %v173 = vld [vmem:[%s171] sm:$0xf]
                  %174 = vst [vmem:[%s172] sm:$0xf] %v173
                  %v175 = vld [vmem:[%s171 + $0x8] sm:$0xf]
                  %176 = vst [vmem:[%s172 + $0x4] sm:$0xf] %v175
                $region59: #{params_loss.1} parent=46 // loop_footer
                  %s170 = sadd.s32 1, %s166
                $region60: #{params_loss.1} parent=46 // loop_footer_branch
                  %165 = sbr.rel target = $region56
                $region61: #{params_loss.1} parent=46 // loop_exit
                  _
              $region47: #{params_loss.1} parent=31 // pred_fallthru
                _
            $region32: #{params_loss.1} parent=27 // pred_fallthru
              _
            // Predicated region
            $region33: #{params_loss.1} parent=27 // pred_check
              _
            $region34: #{params_loss.1} parent=27 // pred_check_branch
              %140 = sbr.rel (0) target = $region36
            $region35: #{params_loss.1} parent=27 // pred_region
              loop: start=0, step=1, limit=1
              $region37: #{params_loss.1} parent=35 // loop_pre_header
                _
              $region38: #{params_loss.1} parent=35 // loop_header
                %s143 = sphi 0, %s147
                %p144 = scmp.ge.s32.totalorder %s143, 1
                %s148 = sphi %s134, %s134
                %s149 = sphi %s132, %s132
              $region39: #{params_loss.1} parent=35 // loop_header_branch
                %146 = sbr.rel (%p144) target = $region43
              $region40: #{params_loss.1} parent=35 // loop_body
                %v150 = vld [vmem:[%s148] sm:$0xf]
                %151 = vst [vmem:[%s149] sm:$0xf] %v150
                %v152 = vld [vmem:[%s148 + $0x8] sm:$0xf]
                %153 = vst [vmem:[%s149 + $0x4] sm:$0xf] %v152
              $region41: #{params_loss.1} parent=35 // loop_footer
                %s147 = sadd.s32 1, %s143
              $region42: #{params_loss.1} parent=35 // loop_footer_branch
                %142 = sbr.rel target = $region38
              $region43: #{params_loss.1} parent=35 // loop_exit
                _
            $region36: #{params_loss.1} parent=27 // pred_fallthru
              _
          $region28: #{params_loss.1} parent=23 // pred_fallthru
            _
          %177 = vnop
        $region24: #{params_loss.1} parent=19 // pred_fallthru
          _
        // Predicated region
        $region62: #{params_loss.1} parent=19 // pred_check
          %p178 = pneg %p56
        $region63: #{params_loss.1} parent=19 // pred_check_branch
          %180 = sbr.rel (%p178) target = $region65
        $region64: #{params_loss.1} parent=19 // pred_region
          %s181 = sand.u32 %s46, 1
          %s182 = sand.u32 %s46, 1
          %s183 = smul.addr %s182, 8
          %s184 = scalar_lea.vmem [#allocation4], %s183
          %s185 = smul.addr %s10, 4
          %s186 = scalar_lea.vmem %s1, %s185
          // Predicated region
          $region66: #{params_loss.1} parent=64 // pred_check
            _
          $region67: #{params_loss.1} parent=64 // pred_check_branch
            %188 = sbr.rel (0) target = $region69
          $region68: #{params_loss.1} parent=64 // pred_region
            // Predicated region
            $region70: #{params_loss.1} parent=68 // pred_check
              _
            $region71: #{params_loss.1} parent=68 // pred_check_branch
              %190 = sbr.rel target = $region73
            $region72: #{params_loss.1} parent=68 // pred_region
              // Predicated region
              $region85: #{params_loss.1} parent=72 // pred_check
                _
              $region86: #{params_loss.1} parent=72 // pred_check_branch
                %207 = sbr.rel (0) target = $region88
              $region87: #{params_loss.1} parent=72 // pred_region
                loop: start=0, step=1, limit=1
                $region89: #{params_loss.1} parent=87 // loop_pre_header
                  _
                $region90: #{params_loss.1} parent=87 // loop_header
                  %s209 = sphi 0, %s213
                  %p210 = scmp.ge.s32.totalorder %s209, 1
                  %s214 = sphi %s186, %s186
                  %s215 = sphi %s184, %s184
                $region91: #{params_loss.1} parent=87 // loop_header_branch
                  %212 = sbr.rel (%p210) target = $region95
                $region92: #{params_loss.1} parent=87 // loop_body
                  _
                $region93: #{params_loss.1} parent=87 // loop_footer
                  %s213 = sadd.s32 1, %s209
                $region94: #{params_loss.1} parent=87 // loop_footer_branch
                  %208 = sbr.rel target = $region90
                $region95: #{params_loss.1} parent=87 // loop_exit
                  _
                loop: start=0, step=1, limit=1
                $region96: #{params_loss.1} parent=87 // loop_pre_header
                  _
                $region97: #{params_loss.1} parent=87 // loop_header
                  %s218 = sphi 0, %s222
                  %p219 = scmp.ge.s32.totalorder %s218, 1
                  %s223 = sphi %s186, %s186
                  %s224 = sphi %s184, %s184
                $region98: #{params_loss.1} parent=87 // loop_header_branch
                  %221 = sbr.rel (%p219) target = $region102
                $region99: #{params_loss.1} parent=87 // loop_body
                  %v225 = vld [vmem:[%s223] sm:$0xf]
                  %226 = vst [vmem:[%s224] sm:$0xf] %v225
                  %v227 = vld [vmem:[%s223 + $0x8] sm:$0xf]
                  %228 = vst [vmem:[%s224 + $0x4] sm:$0xf] %v227
                $region100: #{params_loss.1} parent=87 // loop_footer
                  %s222 = sadd.s32 1, %s218
                $region101: #{params_loss.1} parent=87 // loop_footer_branch
                  %217 = sbr.rel target = $region97
                $region102: #{params_loss.1} parent=87 // loop_exit
                  _
              $region88: #{params_loss.1} parent=72 // pred_fallthru
                _
            $region73: #{params_loss.1} parent=68 // pred_fallthru
              _
            // Predicated region
            $region74: #{params_loss.1} parent=68 // pred_check
              _
            $region75: #{params_loss.1} parent=68 // pred_check_branch
              %192 = sbr.rel (0) target = $region77
            $region76: #{params_loss.1} parent=68 // pred_region
              loop: start=0, step=1, limit=1
              $region78: #{params_loss.1} parent=76 // loop_pre_header
                _
              $region79: #{params_loss.1} parent=76 // loop_header
                %s195 = sphi 0, %s199
                %p196 = scmp.ge.s32.totalorder %s195, 1
                %s200 = sphi %s186, %s186
                %s201 = sphi %s184, %s184
              $region80: #{params_loss.1} parent=76 // loop_header_branch
                %198 = sbr.rel (%p196) target = $region84
              $region81: #{params_loss.1} parent=76 // loop_body
                %v202 = vld [vmem:[%s200] sm:$0xf]
                %203 = vst [vmem:[%s201] sm:$0xf] %v202
                %v204 = vld [vmem:[%s200 + $0x8] sm:$0xf]
                %205 = vst [vmem:[%s201 + $0x4] sm:$0xf] %v204
              $region82: #{params_loss.1} parent=76 // loop_footer
                %s199 = sadd.s32 1, %s195
              $region83: #{params_loss.1} parent=76 // loop_footer_branch
                %194 = sbr.rel target = $region79
              $region84: #{params_loss.1} parent=76 // loop_exit
                _
            $region77: #{params_loss.1} parent=68 // pred_fallthru
              _
          $region69: #{params_loss.1} parent=64 // pred_fallthru
            _
          %229 = vnop
        $region65: #{params_loss.1} parent=19 // pred_fallthru
          _
      $region20: #{params_loss.1} parent=5 // pred_fallthru
        _
      %p230 = scmp.le.s32.totalorder 1, %s10
      %p231 = scmp.lt.s32.totalorder %s10, 3
      %p232 = pnand %p230, %p231
      %p233 = pneg %p232
      // Predicated region
      $region103: #{params_loss.1} parent=5 // pred_check
        _
      $region104: #{params_loss.1} parent=5 // pred_check_branch
        %235 = sbr.rel (%p232) target = $region106
      $region105: #{params_loss.1} parent=5 // pred_region
        %s236 = ssub.s32 %s10, 1
        %s237 = sand.u32 %s23, 1
        %s238 = sand.u32 %s23, 1
        %s239 = smul.addr %s238, 8
        %s240 = scalar_lea.vmem [#allocation3], %s239
        // Predicated region
        $region107: #{params_loss.1} parent=105 // pred_check
          %p241 = pneg %p36
        $region108: #{params_loss.1} parent=105 // pred_check_branch
          %243 = sbr.rel (%p241) target = $region110
        $region109: #{params_loss.1} parent=105 // pred_region
          _
        $region110: #{params_loss.1} parent=105 // pred_fallthru
          _
        %s244 = sand.u32 %s49, 1
        %s245 = sand.u32 %s49, 1
        %s246 = smul.addr %s245, 8
        %s247 = scalar_lea.vmem [#allocation4], %s246
        // Predicated region
        $region111: #{params_loss.1} parent=105 // pred_check
          %p248 = pneg %p62
        $region112: #{params_loss.1} parent=105 // pred_check_branch
          %250 = sbr.rel (%p248) target = $region114
        $region113: #{params_loss.1} parent=105 // pred_region
          _
        $region114: #{params_loss.1} parent=105 // pred_fallthru
          _
        %s251 = sand.u32 %s23, 1
        %s252 = sand.u32 %s23, 1
        %s253 = smul.addr %s252, 8
        %s254 = scalar_lea.vmem [#allocation3], %s253
        %p255 = pneg %p36
        %p256 = pneg %p33
        %s257 = sand.u32 %s49, 1
        %s258 = sand.u32 %s49, 1
        %s259 = smul.addr %s258, 8
        %s260 = scalar_lea.vmem [#allocation4], %s259
        %p261 = pneg %p62
        %p262 = pneg %p59
        %p263 = pneg %p83
        %p264 = pneg %p80
        %p265 = pneg %p104
        %p266 = pneg %p101
        %p267 = scmp.eq.s32.totalorder %s15, 0
        // Predicated region
        $region115: #{params_loss.1} parent=105 // pred_check
          %p268 = pneg %p267
        $region116: #{params_loss.1} parent=105 // pred_check_branch
          %270 = sbr.rel (%p268) target = $region118
        $region117: #{params_loss.1} parent=105 // pred_region
          %vm271 = vcmask 17408
          %272 = vst.msk [vmem:[#allocation2] sm:$0x3] %vm271, 0.0
        $region118: #{params_loss.1} parent=105 // pred_fallthru
          _
        %v273 = vld [vmem:[%s240] sm:$0x7]
        %v274 = vld [vmem:[%s240 + $0x4] sm:$0x7]
        %v275 = vld [vmem:[%s247] sm:$0x7]
        %v276 = vld [vmem:[%s247 + $0x4] sm:$0x7]
        %v277 = vsub.f32 %v273, %v275
        %v278 = vsub.f32 %v274, %v276
        %v279 = vld [vmem:[#allocation2] sm:$0x3]
        %vm280 = vcmask 1042432
        %v281 = vsel %vm280, %v277, 0.0
        %282 = vadd.xlane.f32.xlu0 %v281
        %v283 = vpop.xlane.xlu0 %282
        %v284 = vsel %vm280, %v278, 0.0
        %285 = vadd.xlane.f32.xlu0 %v284
        %v286 = vpop.xlane.xlu0 %285
        %v289 = vlaneseq
        %v290 = vand.u32 %v289, 127
        %v291 = vlaneseq
        %v292 = vshrl.u32 %v291, 7
        %v293 = vsub.s32 %v290, %v292
        %v294 = vrot.slane %v283, %v293
        %v295 = vlaneseq
        %v296 = vshrl.u32 %v295, 7
        %v297 = vsub.s32 %v290, %v296
        %v298 = vrot.slane %v286, %v297
        %vm299 = vcmask 1041409
        %v300 = vsel %vm299, %v298, %v294
        %v302 = vadd.f32 %v279, %v300
        %vm303 = vcmask 17408
        %304 = vst.msk [vmem:[#allocation2] sm:$0x3] %vm303, %v302
        %p305 = scmp.eq.s32.totalorder %s15, 1
        // Predicated region
        $region119: #{params_loss.1} parent=105 // pred_check
          %p306 = pneg %p305
        $region120: #{params_loss.1} parent=105 // pred_check_branch
          %308 = sbr.rel (%p306) target = $region122
        $region121: #{params_loss.1} parent=105 // pred_region
          %v309 = vld [vmem:[#allocation2] sm:$0x3]
          %v310 = vld [vmem:[%s2] sm:$0x7]
          %vm311 = vcmask 23552
          %v313 = vsel %vm311, %v309, 0
          %v316 = vsel %vm280, %v310, 0
          %318 = vmatprep.subr.mxu0 0.0
          %319 = vmatpush1.msra.mxu0 %v316
          %320 = vmatprep.subr.mxu0 0.0
          %321 = vmatpush1.msra.mxu0 0.0
          %322 = vmatprep.subr.mxu0 0.0
          %323 = vmatpush1.msra.mxu0 0.0
          %324 = vmatprep.subr.mxu0 0.0
          %325 = vmatpush1.msra.mxu0 0.0
          %326 = vmatprep.subr.mxu0 0.0
          %327 = vmatpush1.msra.mxu0 0.0
          %328 = vmatprep.subr.mxu0 0.0
          %329 = vmatpush1.msra.mxu0 0.0
          %330 = vmatprep.subr.mxu0 0.0
          %331 = vmatpush1.msra.mxu0 0.0
          %332 = vmatprep.subr.mxu0 0.0
          %333 = vmatpush1.msra.mxu0 0.0
          %334 = vmatprep.subr.mxu0 0.0
          %335 = vmatpush1.msra.mxu0 0.0
          %336 = vmatprep.subr.mxu0 0.0
          %337 = vmatpush1.msra.mxu0 0.0
          %338 = vmatprep.subr.mxu0 0.0
          %339 = vmatpush1.msra.mxu0 0.0
          %340 = vmatprep.subr.mxu0 0.0
          %341 = vmatpush1.msra.mxu0 0.0
          %342 = vmatprep.subr.mxu0 0.0
          %343 = vmatpush1.msra.mxu0 0.0
          %344 = vmatprep.subr.mxu0 0.0
          %345 = vmatpush1.msra.mxu0 0.0
          %346 = vmatprep.subr.mxu0 0.0
          %347 = vmatpush1.msra.mxu0 0.0
          %348 = vmatprep.subr.mxu0 0.0
          %349 = vmatpush1.msra.mxu0 0.0
          %350 = vmatprep.subr.mxu0 0.0
          %351 = vmatpush1.msra.mxu0 0.0
          %352 = vmatprep.subr.mxu0 0.0
          %353 = vmatpush1.msra.mxu0 0.0
          %354 = vmatprep.subr.mxu0 0.0
          %355 = vmatpush1.msra.mxu0 0.0
          %356 = vmatprep.subr.mxu0 0.0
          %357 = vmatpush1.msra.mxu0 0.0
          %358 = vmatprep.subr.mxu0 0.0
          %359 = vmatpush1.msra.mxu0 0.0
          %360 = vmatprep.subr.mxu0 0.0
          %361 = vmatpush1.msra.mxu0 0.0
          %362 = vmatprep.subr.mxu0 0.0
          %363 = vmatpush1.msra.mxu0 0.0
          %364 = vmatprep.subr.mxu0 0.0
          %365 = vmatpush1.msra.mxu0 0.0
          %366 = vmatprep.subr.mxu0 0.0
          %367 = vmatpush1.msra.mxu0 0.0
          %368 = vmatprep.subr.mxu0 0.0
          %369 = vmatpush1.msra.mxu0 0.0
          %370 = vmatprep.subr.mxu0 0.0
          %371 = vmatpush1.msra.mxu0 0.0
          %372 = vmatprep.subr.mxu0 0.0
          %373 = vmatpush1.msra.mxu0 0.0
          %374 = vmatprep.subr.mxu0 0.0
          %375 = vmatpush1.msra.mxu0 0.0
          %376 = vmatprep.subr.mxu0 0.0
          %377 = vmatpush1.msra.mxu0 0.0
          %378 = vmatprep.subr.mxu0 0.0
          %379 = vmatpush1.msra.mxu0 0.0
          %380 = vmatprep.subr.mxu0 0.0
          %381 = vmatpush1.msra.mxu0 0.0
          %382 = vmatprep.mubr.f32.mxu0 0.0
          %383 = vmatmul.mubr.f32.gmra.mrb[0].mxu0 %v313
          %v384 = vpop.f32.mrb[0].mxu0
          %v385 = vadd.f32 0.0, %v384
          %v386 = vpop.f32.mrb[0].mxu0
          %387 = vdwg.mxu0
          %v388 = vand.u32 2147483647, %v385
          %vm389 = vcmask 1041408
          %v390 = vsel %vm389, %v388, 0.0
          %391 = vadd.xlane.f32.xlu0 %v390
          %v392 = vpop.xlane.xlu0 %391
          %v393 = vrot.slane %v392, 4
          %v394 = vadd.f32 %v392, %v393
          %v395 = vrot.slane %v394, 2
          %v396 = vadd.f32 %v394, %v395
          %v397 = vrot.slane %v396, 1
          %v398 = vadd.f32 %v396, %v397
          %s399 = vtos %v398
          %s400 = smul.f32 %s399, 1.3950893e-05
          %s401 = scalar_lea.smem [#allocation5], 0
          %402 = sst [smem:[%s401]] %s400
        $region122: #{params_loss.1} parent=105 // pred_fallthru
          _
        // Predicated region
        $region123: #{params_loss.1} parent=105 // pred_check
          %p403 = pneg %p101
        $region124: #{params_loss.1} parent=105 // pred_check_branch
          %405 = sbr.rel (%p403) target = $region126
        $region125: #{params_loss.1} parent=105 // pred_region
          %s407 = ssub.s32 16, 16
          %408 = vsyncadd [#allocation6], %s407
          %411 = dma.smem_to_hbm [#allocation5], 16, %s3, [#allocation6]
        $region126: #{params_loss.1} parent=105 // pred_fallthru
          _
        // Predicated region
        $region127: #{params_loss.1} parent=105 // pred_check
          %p412 = pneg %p101
        $region128: #{params_loss.1} parent=105 // pred_check_branch
          %414 = sbr.rel (%p412) target = $region130
        $region129: #{params_loss.1} parent=105 // pred_region
          %415 = dma.done [#allocation6], 16
        $region130: #{params_loss.1} parent=105 // pred_fallthru
          _
        %416 = sfence
      $region106: #{params_loss.1} parent=5 // pred_fallthru
        _
      %p417 = scmp.le.s32.totalorder 2, %s10
      // Predicated region
      $region131: #{params_loss.1} parent=5 // pred_check
        %p418 = pneg %p417
      $region132: #{params_loss.1} parent=5 // pred_check_branch
        %420 = sbr.rel (%p418) target = $region134
      $region133: #{params_loss.1} parent=5 // pred_region
        %s421 = ssub.s32 %s10, 2
      $region134: #{params_loss.1} parent=5 // pred_fallthru
        _
    $region6: #{params_loss.1} parent=1 // loop_footer
      %s14 = sadd.s32 1, %s10
    $region7: #{params_loss.1} parent=1 // loop_footer_branch
      %9 = sbr.rel target = $region3
    $region8: #{params_loss.1} parent=1 // loop_exit
      _
    %422 = vsyncpa [#allocation6], 1
    %s423 = scalar_lea.sflag [#allocation6], 1
    %424 = vsyncpa %s423, 1

</llo_original>
